<compile_context>
chip_gen: v6e
topology: v6e:2x2x1
jax: 0.10.0
libtpu: 0.0.40
codegen_flags: <defaults>
</compile_context>

<pallas_src>
import functools

import jax
import jax.numpy as jnp
from jax.experimental import pallas as pl
from jax.experimental.pallas import tpu as pltpu

LANE = 128


def _round_up(n: int, m: int) -> int:
    return ((n + m - 1) // m) * m


def mlp_kernel(xt_ref, w1_ref, b1_ref, w2_ref, b2_ref, o_ref):
    # fc1: (hidden, in) @ (in, tb) on the MXU -> (hidden, tb), f32 accumulate.
    h = jnp.dot(w1_ref[...], xt_ref[...], preferred_element_type=jnp.float32)
    h = jnp.maximum(h + b1_ref[...], 0.0)                   # (hidden,1) bias + ReLU on VPU
    # fc2 (output_dim == 1): VPU multiply by the (hidden, 1) weight column and
    # reduce over the sublane (hidden) axis on the XLU -> already lane-dense.
    z = jnp.sum(h * w2_ref[...], axis=0, keepdims=True)     # (1, tb)
    z = z + b2_ref[0]                                        # scalar bias from SMEM
    o_ref[...] = jax.nn.sigmoid(z).astype(o_ref.dtype)       # exp/recip on EUP


@functools.partial(jax.jit, static_argnames=("block_batch",))
def simple_model_forward(x, fc1_w, fc1_b, fc2_w, fc2_b, *, block_batch=8192):
    """Forward pass of SimpleModel.

    x:      (B, input_dim) f32
    fc1_w:  (hidden_dim, input_dim)   -- PyTorch nn.Linear layout
    fc1_b:  (hidden_dim,)
    fc2_w:  (output_dim, hidden_dim)
    fc2_b:  (output_dim,)
    returns (B, output_dim) f32
    """
    B, in_dim = x.shape
    hidden = fc1_w.shape[0]
    out_dim = fc2_w.shape[0]
    if out_dim != 1:
        # TODO(synk): kernel packs batch along lanes and reduces fc2 to a single
        # output row; generalize out_specs / the fc2 reduce for output_dim > 1.
        raise NotImplementedError("Pallas SimpleModel kernel supports output_dim == 1 only")

    # Batch on the lane axis: the kernel reads x^T in (in_dim, tb) blocks.
    # (Callers that can produce x already transposed avoid this XLA transpose.)
    xt = x.T                                  # (in_dim, B)
    b1_col = fc1_b.reshape(hidden, 1)         # broadcasts along lanes in-kernel
    w2_col = fc2_w.reshape(hidden, 1)         # fc2 weight as a sublane column
    b2 = fc2_b.reshape(1)                     # scalar, lives in SMEM

    # Tile selection: full-extent single block for tiny batches; otherwise a
    # lane-aligned tile capped at block_batch and sized so the grid has >= 2
    # steps (lets dimension_semantics=("parallel",) feed both v7x TensorCores).
    if B <= LANE:
        tb = B
    else:
        tb = min(_round_up(block_batch, LANE), _round_up(pl.cdiv(B, 2), LANE))
        tb = max(tb, LANE)
    grid = (pl.cdiv(B, tb),)                  # ragged tail handled by Pallas, no jnp.pad

    out = pl.pallas_call(
        mlp_kernel,
        out_shape=jax.ShapeDtypeStruct((1, B), jnp.float32),
        grid=grid,
        in_specs=[
            pl.BlockSpec((in_dim, tb), lambda i: (0, i)),       # x^T: streamed over batch
            pl.BlockSpec((hidden, in_dim), lambda i: (0, 0)),   # fc1 weight: VMEM-resident
            pl.BlockSpec((hidden, 1), lambda i: (0, 0)),        # fc1 bias column
            pl.BlockSpec((hidden, 1), lambda i: (0, 0)),        # fc2 weight column
            pl.BlockSpec(memory_space=pltpu.MemorySpace.SMEM),  # fc2 bias scalar
        ],
        out_specs=pl.BlockSpec((1, tb), lambda i: (0, i)),       # lane-dense output
        compiler_params=pltpu.CompilerParams(
            dimension_semantics=("parallel",),                   # shard batch tiles over TCs
        ),
    )(xt, fc1_w, b1_col, w2_col, b2)
    return out.reshape(B, out_dim)


def init_params(key, input_dim=10, hidden_dim=20, output_dim=1):
    """nn.Linear-style init: uniform(-1/sqrt(fan_in), 1/sqrt(fan_in)), PyTorch layouts."""
    k1, k2, k3, k4 = jax.random.split(key, 4)
    bound1 = 1.0 / jnp.sqrt(float(input_dim))
    bound2 = 1.0 / jnp.sqrt(float(hidden_dim))
    fc1_w = jax.random.uniform(k1, (hidden_dim, input_dim), jnp.float32, -bound1, bound1)
    fc1_b = jax.random.uniform(k2, (hidden_dim,), jnp.float32, -bound1, bound1)
    fc2_w = jax.random.uniform(k3, (output_dim, hidden_dim), jnp.float32, -bound2, bound2)
    fc2_b = jax.random.uniform(k4, (output_dim,), jnp.float32, -bound2, bound2)
    return fc1_w, fc1_b, fc2_w, fc2_b


if __name__ == "__main__":
    key = jax.random.PRNGKey(0)
    k_x, k_p, k_x2 = jax.random.split(key, 3)

    B, input_dim, hidden_dim, output_dim = 8, 10, 20, 1
    x = jax.random.normal(k_x, (B, input_dim), jnp.float32)
    fc1_w, fc1_b, fc2_w, fc2_b = init_params(k_p, input_dim, hidden_dim, output_dim)

    def ref_fwd(xx):
        h = jnp.maximum(xx @ fc1_w.T + fc1_b, 0.0)
        return jax.nn.sigmoid(h @ fc2_w.T + fc2_b)

    # Small-shape run matching the PyTorch module defaults (single block).
    out = jax.block_until_ready(simple_model_forward(x, fc1_w, fc1_b, fc2_w, fc2_b))
    assert out.shape == (B, output_dim)
    assert jnp.allclose(out, ref_fwd(x), atol=1e-5, rtol=1e-5)

    # Multi-block grid with a ragged boundary block (no wrapper-side padding).
    B2 = 300
    x2 = jax.random.normal(k_x2, (B2, input_dim), jnp.float32)
    out2 = jax.block_until_ready(
        simple_model_forward(x2, fc1_w, fc1_b, fc2_w, fc2_b, block_batch=128))
    assert out2.shape == (B2, output_dim)
    assert jnp.allclose(out2, ref_fwd(x2), atol=1e-5, rtol=1e-5)

    print("KERNEL_OK")
</pallas_src>

<mosaic_0001>
module attributes {stable_mosaic.version = 11 : i64} {
  func.func @mlp_kernel(%arg0: i32, %arg1: memref<10x8xf32, #tpu.memory_space<vmem>>, %arg2: memref<20x10xf32, #tpu.memory_space<vmem>>, %arg3: memref<20x1xf32, #tpu.memory_space<vmem>>, %arg4: memref<20x1xf32, #tpu.memory_space<vmem>>, %arg5: memref<1xf32, #tpu.memory_space<smem>>, %arg6: memref<1x8xf32, #tpu.memory_space<vmem>>) attributes {dimension_semantics = [#tpu.dimension_semantics<parallel>], iteration_bounds = array<i64: 1>, scalar_prefetch = 0 : i64, scratch_operands = 0 : i64, tpu.core_type = #tpu.core_type<tc>, window_params = [{transform_indices = @transform_0, window_bounds = array<i64: 10, 8>}, {pipeline_mode = #tpu.pipeline_mode<synchronous>, transform_indices = @transform_1, window_bounds = array<i64: 20, 10>}, {pipeline_mode = #tpu.pipeline_mode<synchronous>, transform_indices = @transform_2, window_bounds = array<i64: 20, 1>}, {pipeline_mode = #tpu.pipeline_mode<synchronous>, transform_indices = @transform_3, window_bounds = array<i64: 20, 1>}, {transform_indices = @transform_4, window_bounds = array<i64: 1>}, {transform_indices = @transform_5, window_bounds = array<i64: 1, 8>}]} {
    %c0 = arith.constant 0 : index
    %c0_0 = arith.constant 0 : index
    %0 = vector.load %arg2[%c0, %c0_0] : memref<20x10xf32, #tpu.memory_space<vmem>>, vector<20x10xf32>
    %c0_1 = arith.constant 0 : index
    %c0_2 = arith.constant 0 : index
    %1 = vector.load %arg1[%c0_1, %c0_2] : memref<10x8xf32, #tpu.memory_space<vmem>>, vector<10x8xf32>
    %cst = arith.constant dense<0.000000e+00> : vector<20x8xf32>
    %2 = tpu.matmul %0, %1, %cst {dimension_numbers = #tpu.dot_dimension_numbers<[1], [0], [0], [1], [0, 0, 1, 1], [], []>} : vector<20x10xf32>, vector<10x8xf32>, vector<20x8xf32> -> vector<20x8xf32>
    %c0_3 = arith.constant 0 : index
    %c0_4 = arith.constant 0 : index
    %3 = vector.load %arg3[%c0_3, %c0_4] : memref<20x1xf32, #tpu.memory_space<vmem>>, vector<20x1xf32>
    %4 = vector.broadcast %3 : vector<20x1xf32> to vector<20x8xf32>
    %5 = arith.addf %2, %4 : vector<20x8xf32>
    %cst_5 = arith.constant 0.000000e+00 : f32
    %6 = vector.broadcast %cst_5 : f32 to vector<20x8xf32>
    %7 = arith.maximumf %5, %6 : vector<20x8xf32>
    %c0_6 = arith.constant 0 : index
    %c0_7 = arith.constant 0 : index
    %8 = vector.load %arg4[%c0_6, %c0_7] : memref<20x1xf32, #tpu.memory_space<vmem>>, vector<20x1xf32>
    %9 = vector.broadcast %8 : vector<20x1xf32> to vector<20x8xf32>
    %10 = arith.mulf %7, %9 : vector<20x8xf32>
    %cst_8 = arith.constant dense<0.000000e+00> : vector<8xf32>
    %11 = vector.multi_reduction <add>, %10, %cst_8 [0] : vector<20x8xf32> to vector<8xf32>
    %12 = vector.shape_cast %11 : vector<8xf32> to vector<1x8xf32>
    %c0_9 = arith.constant 0 : index
    %13 = memref.load %arg5[%c0_9] : memref<1xf32, #tpu.memory_space<smem>>
    %14 = vector.broadcast %13 : f32 to vector<1x8xf32>
    %15 = arith.addf %12, %14 : vector<1x8xf32>
    %16 = arith.negf %15 : vector<1x8xf32>
    %17 = math.exp %16 : vector<1x8xf32>
    %cst_10 = arith.constant 1.000000e+00 : f32
    %18 = vector.broadcast %cst_10 : f32 to vector<1x8xf32>
    %19 = arith.addf %18, %17 : vector<1x8xf32>
    %20 = arith.divf %18, %19 : vector<1x8xf32>
    %c0_11 = arith.constant 0 : index
    %c0_12 = arith.constant 0 : index
    %21 = vector.load %arg6[%c0_11, %c0_12] : memref<1x8xf32, #tpu.memory_space<vmem>>, vector<1x8xf32>
    tpu.vector_store %arg6[%c0_11, %c0_12], %20 {strides = array<i32>} : memref<1x8xf32, #tpu.memory_space<vmem>>, vector<1x8xf32>,
    return
  }
  func.func @transform_0(%arg0: i32) -> (i32, i32) {
    %c0_i32 = arith.constant 0 : i32
    %c0_i32_0 = arith.constant 0 : i32
    return %c0_i32, %arg0 : i32, i32
  }
  func.func @transform_1(%arg0: i32) -> (i32, i32) {
    %c0_i32 = arith.constant 0 : i32
    %c0_i32_0 = arith.constant 0 : i32
    %c0_i32_1 = arith.constant 0 : i32
    return %c0_i32, %c0_i32_0 : i32, i32
  }
  func.func @transform_2(%arg0: i32) -> (i32, i32) {
    %c0_i32 = arith.constant 0 : i32
    %c0_i32_0 = arith.constant 0 : i32
    %c0_i32_1 = arith.constant 0 : i32
    return %c0_i32, %c0_i32_0 : i32, i32
  }
  func.func @transform_3(%arg0: i32) -> (i32, i32) {
    %c0_i32 = arith.constant 0 : i32
    %c0_i32_0 = arith.constant 0 : i32
    %c0_i32_1 = arith.constant 0 : i32
    return %c0_i32, %c0_i32_0 : i32, i32
  }
  func.func @transform_4(%arg0: i32) -> i32 {
    %c0_i32 = arith.constant 0 : i32
    %c0_i32_0 = arith.constant 0 : i32
    return %c0_i32 : i32
  }
  func.func @transform_5(%arg0: i32) -> (i32, i32) {
    %c0_i32 = arith.constant 0 : i32
    %c0_i32_0 = arith.constant 0 : i32
    return %c0_i32, %arg0 : i32, i32
  }
}

</mosaic_0001>

<llo_original>
// kernel: simple_model_forward.1
$region0: #{simple_model_forward.1}
  #allocation0 [shape = 'u32[]', space=smem, size = 0x4, offset = 0x4, fixed_abs, tag = 'smem constant byte address 0x4 - core index']
  #allocation1 [shape = 'u32[144,128]{1,0:T(1,128)}', space=vmem, size = 0x12000, scoped, tag = 'internal scratch']
  #allocation2 [shape = 'f32[1]{0:T(128)S(6)}', space=smem, size = 0x200, scoped, tag = 'scoped memory for simple_model_forward.1']
  %s0 = inlined_call_operand.vmem [shape: f32[10,8], index: 0, kind: input, shape index: {}]
  %s1 = inlined_call_operand.vmem [shape: f32[20,10], index: 1, kind: input, shape index: {}]
  %s2 = inlined_call_operand.vmem [shape: f32[20,1], index: 2, kind: input, shape index: {}]
  %s3 = inlined_call_operand.vmem [shape: f32[20,1], index: 3, kind: input, shape index: {}]
  %s4 = inlined_call_operand.<no memory space> [shape: f32[1], index: 4, kind: input, shape index: {}]
  %s5 = inlined_call_operand.hbm [shape: f32[1,8], index: 5, kind: output, shape index: {}]
  %s6 = sld [smem:[#allocation0]]
  $region30: #{simple_model_forward.1} parent=0
    _
  %s8 = ssub.s32 1, %s6
  %s9 = scalar_select 0, %s8, %s6
  %10 = sst [smem:[#allocation2]] %s4
  $region1: #{simple_model_forward.1} parent=0
    #allocation3 [shape = 'u8[512]{0}', space=vmem, size = 0x400, scoped, tag = 'output window, operand 0, single buffered']
    #allocation4 [shape = 's32[1]{0}', space=sflag, size = 0x4, scoped, tag = 'scoped memory for simple_model_forward.1']
    %11 = vsyncpa [#allocation4], 0
    // Predicated region
    $region2: #{simple_model_forward.1} parent=1 // pred_check
      _
    $region3: #{simple_model_forward.1} parent=1 // pred_check_branch
      %13 = sbr.rel (0) target = $region5
    $region4: #{simple_model_forward.1} parent=1 // pred_region
      _
    $region5: #{simple_model_forward.1} parent=1 // pred_fallthru
      _
    // Predicated region
    $region6: #{simple_model_forward.1} parent=1 // pred_check
      _
    $region7: #{simple_model_forward.1} parent=1 // pred_check_branch
      %15 = sbr.rel (0) target = $region9
    $region8: #{simple_model_forward.1} parent=1 // pred_region
      _
    $region9: #{simple_model_forward.1} parent=1 // pred_fallthru
      _
    // Predicated region
    $region10: #{simple_model_forward.1} parent=1 // pred_check
      _
    $region11: #{simple_model_forward.1} parent=1 // pred_check_branch
      %17 = sbr.rel (0) target = $region13
    $region12: #{simple_model_forward.1} parent=1 // pred_region
      _
    $region13: #{simple_model_forward.1} parent=1 // pred_fallthru
      _
    // Predicated region
    $region14: #{simple_model_forward.1} parent=1 // pred_check
      _
    $region15: #{simple_model_forward.1} parent=1 // pred_check_branch
      %19 = sbr.rel (0) target = $region17
    $region16: #{simple_model_forward.1} parent=1 // pred_region
      _
    $region17: #{simple_model_forward.1} parent=1 // pred_fallthru
      _
    // Predicated region
    $region18: #{simple_model_forward.1} parent=1 // pred_check
      _
    $region19: #{simple_model_forward.1} parent=1 // pred_check_branch
      %21 = sbr.rel (0) target = $region21
    $region20: #{simple_model_forward.1} parent=1 // pred_region
      _
    $region21: #{simple_model_forward.1} parent=1 // pred_fallthru
      _
    %v22 = vld [vmem:[%s1] sm:$0xff]
    %v23 = vld [vmem:[%s1 + $0x8] sm:$0xff]
    %v24 = vld [vmem:[%s1 + $0x10] sm:$0xf]
    %v25 = vld [vmem:[%s0] sm:$0xff]
    %v26 = vld [vmem:[%s0 + $0x8] sm:$0x3]
    %v27 = vld [vmem:[%s2] sm:$0xff]
    %v28 = vld [vmem:[%s2 + $0x8] sm:$0xff]
    %v29 = vld [vmem:[%s2 + $0x10] sm:$0xf]
    %31 = vset.pattern.permute.xlu0 0
    %32 = vperm.xlu0 %31, %v27
    %v33 = vpop.permute.xlu0 %32
    %36 = vset.pattern.permute.xlu0 0
    %37 = vperm.xlu0 %36, %v28
    %v38 = vpop.permute.xlu0 %37
    %41 = vset.pattern.permute.xlu0 0
    %42 = vperm.xlu0 %41, %v29
    %v43 = vpop.permute.xlu0 %42
    %vm45 = vcmask 80896
    %v47 = vsel %vm45, %v22, 0
    %v50 = vsel %vm45, %v23, 0
    %v53 = vsel %vm45, %v24, 0
    %vm55 = vcmask 1041408
    %v57 = vsel %vm55, %v26, 0
    %59 = vmatprep.subr.mxu0 0.0
    %60 = vmatpush1.msra.mxu0 0.0
    %61 = vmatprep.subr.mxu0 0.0
    %62 = vmatpush1.msra.mxu0 0.0
    %63 = vmatprep.subr.mxu0 0.0
    %64 = vmatpush1.msra.mxu0 0.0
    %65 = vmatprep.subr.mxu0 0.0
    %66 = vmatpush1.msra.mxu0 0.0
    %67 = vmatprep.subr.mxu0 0.0
    %68 = vmatpush1.msra.mxu0 0.0
    %69 = vmatprep.subr.mxu0 0.0
    %70 = vmatpush1.msra.mxu0 0.0
    %71 = vmatprep.subr.mxu0 0.0
    %72 = vmatpush1.msra.mxu0 0.0
    %73 = vmatprep.subr.mxu0 0.0
    %74 = vmatpush1.msra.mxu0 0.0
    %75 = vmatprep.subr.mxu0 0.0
    %76 = vmatpush1.msra.mxu0 0.0
    %77 = vmatprep.subr.mxu0 0.0
    %78 = vmatpush1.msra.mxu0 0.0
    %79 = vmatprep.subr.mxu0 0.0
    %80 = vmatpush1.msra.mxu0 0.0
    %81 = vmatprep.subr.mxu0 0.0
    %82 = vmatpush1.msra.mxu0 0.0
    %83 = vmatprep.subr.mxu0 0.0
    %84 = vmatpush1.msra.mxu0 0.0
    %85 = vmatprep.subr.mxu0 0.0
    %86 = vmatpush1.msra.mxu0 0.0
    %87 = vmatprep.subr.mxu0 0.0
    %88 = vmatpush1.msra.mxu0 %v57
    %89 = vmatprep.subr.mxu0 0.0
    %90 = vmatpush1.msra.mxu0 %v25
    %91 = vmatprep.subr.mxu0 0.0
    %92 = vmatpush2.msra.mxu0 0.0
    %93 = vmatprep.subr.mxu0 0.0
    %94 = vmatpush2.msra.mxu0 0.0
    %95 = vmatprep.subr.mxu0 0.0
    %96 = vmatpush2.msra.mxu0 0.0
    %97 = vmatprep.subr.mxu0 0.0
    %98 = vmatpush2.msra.mxu0 0.0
    %99 = vmatprep.subr.mxu0 0.0
    %100 = vmatpush2.msra.mxu0 0.0
    %101 = vmatprep.subr.mxu0 0.0
    %102 = vmatpush2.msra.mxu0 0.0
    %103 = vmatprep.subr.mxu0 0.0
    %104 = vmatpush2.msra.mxu0 0.0
    %105 = vmatprep.subr.mxu0 0.0
    %106 = vmatpush2.msra.mxu0 0.0
    %107 = vmatprep.subr.mxu0 0.0
    %108 = vmatpush2.msra.mxu0 0.0
    %109 = vmatprep.subr.mxu0 0.0
    %110 = vmatpush2.msra.mxu0 0.0
    %111 = vmatprep.subr.mxu0 0.0
    %112 = vmatpush2.msra.mxu0 0.0
    %113 = vmatprep.subr.mxu0 0.0
    %114 = vmatpush2.msra.mxu0 0.0
    %115 = vmatprep.subr.mxu0 0.0
    %116 = vmatpush2.msra.mxu0 0.0
    %117 = vmatprep.subr.mxu0 0.0
    %118 = vmatpush2.msra.mxu0 0.0
    %119 = vmatprep.subr.mxu0 0.0
    %120 = vmatpush2.msra.mxu0 0.0
    %121 = vmatprep.subr.mxu0 0.0
    %122 = vmatpush2.msra.mxu0 0.0
    %123 = vmatprep.mubr.f32.mxu0 0.0
    %124 = vmatmul.mubr.f32.gmra.mxu0 %v47
    %v125 = vpop.f32.mrf.mxu0
    %v126 = vadd.f32 %v33, %v125
    %v127 = vpop.f32.mrf.mxu0
    %128 = vmatprep.mubr.f32.mxu0 0.0
    %129 = vmatmul.mubr.f32.gmra.mxu0 %v50
    %v130 = vpop.f32.mrf.mxu0
    %v131 = vadd.f32 %v38, %v130
    %v132 = vpop.f32.mrf.mxu0
    %133 = vmatprep.mubr.f32.mxu0 0.0
    %134 = vmatmul.mubr.f32.gmra.mxu0 %v53
    %v135 = vpop.f32.mrf.mxu0
    %v136 = vadd.f32 %v43, %v135
    %v137 = vpop.f32.mrf.mxu0
    %138 = vdwg.mxu0
    %v139 = vmax.f32 %v126, 0.0
    %v140 = vmax.f32 %v131, 0.0
    %v141 = vmax.f32 %v136, 0.0
    %v142 = vld [vmem:[%s3] sm:$0xff]
    %v143 = vld [vmem:[%s3 + $0x8] sm:$0xff]
    %v144 = vld [vmem:[%s3 + $0x10] sm:$0xf]
    %146 = vset.pattern.permute.xlu0 0
    %147 = vperm.xlu0 %146, %v142
    %v148 = vpop.permute.xlu0 %147
    %151 = vset.pattern.permute.xlu0 0
    %152 = vperm.xlu0 %151, %v143
    %v153 = vpop.permute.xlu0 %152
    %156 = vset.pattern.permute.xlu0 0
    %157 = vperm.xlu0 %156, %v144
    %v158 = vpop.permute.xlu0 %157
    %v160 = vmul.f32 %v139, %v148
    %v161 = vmul.f32 %v140, %v153
    %v162 = vmul.f32 %v141, %v158
    %vm163 = vcmask 64512
    %v164 = vsel %vm163, %v160, 0.0
    %v165 = vsel %vm163, %v161, 0.0
    %v166 = vadd.f32 %v164, %v165
    %vm167 = vcmask 60416
    %v168 = vsel %vm167, %v162, 0.0
    %v169 = vadd.f32 %v166, %v168
    %v170 = vrot.slane %v169, 4
    %v171 = vadd.f32 %v169, %v170
    %v172 = vrot.slane %v171, 2
    %v173 = vadd.f32 %v171, %v172
    %v174 = vrot.slane %v173, 1
    %v175 = vadd.f32 %v173, %v174
    %s176 = sld [smem:[#allocation2]]
    %v177 = vstv %s176
    %v178 = vadd.f32 %v175, %v177
    %v179 = vxor.u32 %v178, 2147483648
    %v180 = vmul.f32 %v179, 1.442695
    %v181 = vpow.pop %v180
    %v182 = vadd.f32 %v181, 1.0
    %v183 = vrcp.pop %v182
    %v184 = vmul.f32 1.0, %v183
    %vm185 = vcmask 57344
    %186 = vst.msk [vmem:[#allocation3] sm:$0x1] %vm185, %v184
    // Predicated region
    $region22: #{simple_model_forward.1} parent=1 // pred_check
      _
    $region23: #{simple_model_forward.1} parent=1 // pred_check_branch
      %188 = sbr.rel (0) target = $region25
    $region24: #{simple_model_forward.1} parent=1 // pred_region
      %s190 = ssub.s32 16, 16
      %191 = vsyncadd [#allocation4], %s190
      %s193 = sshll.u32 [#allocation3], 4
      %s194 = int_to_ptr.vmem [resolvable:$true] %s193
      %196 = dma.vmem_to_hbm [thread:$0]  %s194, 16, %s5, [#allocation4]
    $region25: #{simple_model_forward.1} parent=1 // pred_fallthru
      _
    // Predicated region
    $region26: #{simple_model_forward.1} parent=1 // pred_check
      _
    $region27: #{simple_model_forward.1} parent=1 // pred_check_branch
      %198 = sbr.rel (0) target = $region29
    $region28: #{simple_model_forward.1} parent=1 // pred_region
      %199 = dma.done [#allocation4], 16
    $region29: #{simple_model_forward.1} parent=1 // pred_fallthru
      _
    %200 = vsyncpa [#allocation4], 1

</llo_original>
